<compile_context>
chip_gen: v7x
topology: tpu7x:2x2x1
jax: 0.10.0
libtpu: 0.0.40
codegen_flags: <defaults>
</compile_context>

<pallas_src>
import jax
import jax.numpy as jnp
from jax import lax
from jax.experimental import pallas as pl
from jax.experimental.pallas import tpu as pltpu

LANE = 128


def _round_up(x, m):
    return (x + m - 1) // m * m


def _model_kernel(x_ref, wf_ref, b1_ref, w2_ref, b2_ref, w3_ref, b3_ref,
                  wh_ref, out_ref):
    f32, bf16 = jnp.float32, jnp.bfloat16

    x = x_ref[...]                                     # (TB, F) f32

    # Fused front matmul (f32: contraction is only F=48, MXU has huge slack):
    #   columns = [cat_out | grid_out | bu | gb_h1_pre | mlp_h1_pre], 5 x 128
    front = jnp.dot(x, wf_ref[...], preferred_element_type=f32)   # (TB, 640)

    cat_out = front[:, 0 * LANE:1 * LANE]              # lanes K..127 are zero
    grid_out = front[:, 1 * LANE:2 * LANE]
    bu = front[:, 2 * LANE:3 * LANE]

    # Block-diagonal fused tail: both Model_two nets share each MXU push.
    h = jnp.maximum(front[:, 3 * LANE:5 * LANE] + b1_ref[...], 0.0)       # (TB, 256)
    h2 = jnp.maximum(
        jnp.dot(h.astype(bf16), w2_ref[...], preferred_element_type=f32)
        + b2_ref[...], 0.0)                                                # (TB, 128)
    p = jax.nn.sigmoid(
        jnp.dot(h2.astype(bf16), w3_ref[...], preferred_element_type=f32)
        + b3_ref[...])                                                     # (TB, 256) = [bi | mlp]
    # Padded lanes of p hold sigmoid(0)=0.5; they are masked by zero lanes in wh.

    cg_bu = cat_out * grid_out + bu                                        # (TB, 128)

    # NeuMF head, lane-major: out[0, r] = sum_j wh[0, j] * act[r, j]
    # via dot_general contracting the lane axes (a @ b.T, attention-style),
    # so the result lands with the batch along lanes -> lane-dense store.
    dn = (((1,), (1,)), ((), ()))
    wh = wh_ref[...]                                                       # (8, 384) bf16, row 0 real
    head = (lax.dot_general(wh[:, :LANE], cg_bu.astype(bf16), dn,
                            preferred_element_type=f32)
            + lax.dot_general(wh[:, LANE:], p.astype(bf16), dn,
                              preferred_element_type=f32))                 # (8, TB)
    out_ref[0] = head[0:1, :]                                              # (1, TB) lane-dense


def init_params(key, category_len, grid_len, K):
    ks = jax.random.split(key, 16)
    u = lambda k, shape, fan_in: jax.random.uniform(
        k, shape, jnp.float32, -1.0 / jnp.sqrt(fan_in), 1.0 / jnp.sqrt(fan_in))
    p = {}
    # Model_one weights stored already transposed: (in, out)
    p["wc"] = u(ks[0], (category_len, K), category_len)
    p["wg"] = u(ks[1], (grid_len, K), grid_len)
    p["wcb"] = u(ks[2], (category_len, K), category_len)
    # grid_bias_model (Model_two): grid_len -> 128 -> 64 -> K
    p["gb_w1"] = u(ks[3], (grid_len, 128), grid_len)
    p["gb_b1"] = u(ks[4], (1, 128), grid_len)
    p["gb_w2"] = u(ks[5], (128, 64), 128)
    p["gb_b2"] = u(ks[6], (1, 64), 128)
    p["gb_w3"] = u(ks[7], (64, K), 64)
    p["gb_b3"] = u(ks[8], (1, K), 64)
    # MLP_model (Model_two): 2K -> 128 -> 64 -> K
    p["mlp_w1"] = u(ks[9], (2 * K, 128), 2 * K)
    p["mlp_b1"] = u(ks[10], (1, 128), 2 * K)
    p["mlp_w2"] = u(ks[11], (128, 64), 128)
    p["mlp_b2"] = u(ks[12], (1, 64), 128)
    p["mlp_w3"] = u(ks[13], (64, K), 64)
    p["mlp_b3"] = u(ks[14], (1, K), 64)
    # NeuMF_model: 2K -> 1, no bias
    p["wn"] = u(ks[15], (2 * K, 1), 2 * K)
    return p


def prepare_params(params):
    """Build the fused / block-diagonal, lane-aligned weight set."""
    f32, bf16 = jnp.float32, jnp.bfloat16
    category_len, K = params["wc"].shape
    grid_len = params["wg"].shape[0]
    F = category_len + grid_len
    G = LANE

    wc, wg, wcb = params["wc"], params["wg"], params["wcb"]

    # MLP_model.hidden1 folded into the front matmul (linear composition):
    #   cat_out @ w1[:K] + grid_out @ w1[K:] == xc @ (wc @ w1[:K]) + xg @ (wg @ w1[K:])
    wc_m1 = wc @ params["mlp_w1"][:K, :]          # (category_len, 128)
    wg_m1 = wg @ params["mlp_w1"][K:, :]          # (grid_len, 128)

    # Front weight: rows = [category rows | grid rows],
    # column groups = [cat | grid | bu | gb_h1 | mlp_h1], each 128 lanes.
    w_front = jnp.zeros((F, 5 * G), f32)
    w_front = w_front.at[:category_len, 0:K].set(wc)
    w_front = w_front.at[category_len:, G:G + K].set(wg)
    w_front = w_front.at[:category_len, 2 * G:2 * G + K].set(wcb)
    w_front = w_front.at[category_len:, 3 * G:4 * G].set(params["gb_w1"])
    w_front = w_front.at[:category_len, 4 * G:5 * G].set(wc_m1)
    w_front = w_front.at[category_len:, 4 * G:5 * G].set(wg_m1)

    b1 = jnp.concatenate([params["gb_b1"], params["mlp_b1"]], axis=1).astype(f32)   # (1, 256)

    # Block-diagonal tail layer 2: (256, 128), [gb | mlp] along both axes.
    w2 = jnp.zeros((2 * G, G), f32)
    w2 = w2.at[0:G, 0:64].set(params["gb_w2"])
    w2 = w2.at[G:2 * G, 64:128].set(params["mlp_w2"])
    b2 = jnp.concatenate([params["gb_b2"], params["mlp_b2"]], axis=1).astype(f32)   # (1, 128)

    # Block-diagonal tail layer 3: (128, 256), outputs [bi(128) | mlp(128)].
    w3 = jnp.zeros((G, 2 * G), f32)
    w3 = w3.at[0:64, 0:K].set(params["gb_w3"])
    w3 = w3.at[64:128, G:G + K].set(params["mlp_w3"])
    b3 = jnp.zeros((1, 2 * G), f32)
    b3 = b3.at[:, 0:K].set(params["gb_b3"])
    b3 = b3.at[:, G:G + K].set(params["mlp_b3"])

    # Head weights, one (8, 384) row-0-real array: [wn_a | wn_a | wn_b],
    # padded lanes zero so the sigmoid(0)=0.5 junk lanes of p never contribute.
    wn = params["wn"][:, 0]
    w_head = jnp.zeros((8, 3 * G), f32)
    w_head = w_head.at[0, 0:K].set(wn[:K])
    w_head = w_head.at[0, G:G + K].set(wn[:K])
    w_head = w_head.at[0, 2 * G:2 * G + K].set(wn[K:])

    return {
        "w_front": w_front,                 # f32: precision for the SVD path
        "b1": b1,
        "w2": w2.astype(bf16),
        "b2": b2,
        "w3": w3.astype(bf16),
        "b3": b3,
        "w_head": w_head.astype(bf16),
    }


def model_forward(category_input, grid_input, packed, *, block_b=2048):
    # block_b: sweep 2048-4096 on v5e/v6e (raise vmem_limit_bytes with it);
    # keep <= 2048 on v7x (64 MiB physical VMEM) and prefer B >= 2*block_b so
    # the "parallel" batch axis gives both v7x TensorCores work.
    B = category_input.shape[0]
    x = jnp.concatenate([category_input, grid_input], axis=1).astype(jnp.float32)
    F = x.shape[1]

    tb = min(block_b, _round_up(B, 8))
    b_pad = _round_up(B, tb)
    if b_pad != B:                          # only materialized when B % tb != 0
        x = jnp.pad(x, ((0, b_pad - B), (0, 0)))
    num_tiles = b_pad // tb

    weights = (packed["w_front"], packed["b1"], packed["w2"], packed["b2"],
               packed["w3"], packed["b3"], packed["w_head"])

    out = pl.pallas_call(
        _model_kernel,
        out_shape=jax.ShapeDtypeStruct((num_tiles, 1, tb), jnp.float32),
        grid_spec=pltpu.PrefetchScalarGridSpec(
            num_scalar_prefetch=0,
            grid=(num_tiles,),
            in_specs=[pl.BlockSpec((tb, F), lambda i: (i, 0))]
                    + [pl.BlockSpec(w.shape, lambda i: (0, 0)) for w in weights],
            out_specs=pl.BlockSpec((1, 1, tb), lambda i: (i, 0, 0)),
        ),
        compiler_params=pltpu.CompilerParams(
            dimension_semantics=("parallel",),
            vmem_limit_bytes=32 * 1024 * 1024,
        ),
    )(x, *weights)
    return out.reshape(-1)[:B, None]


def model_forward_ref(category_input, grid_input, params):
    """Plain-JAX f32 reference matching the PyTorch forward."""
    cat_out = category_input @ params["wc"]
    grid_out = grid_input @ params["wg"]
    bu = category_input @ params["wcb"]
    h = jnp.maximum(grid_input @ params["gb_w1"] + params["gb_b1"], 0.0)
    h = jnp.maximum(h @ params["gb_w2"] + params["gb_b2"], 0.0)
    bi = jax.nn.sigmoid(h @ params["gb_w3"] + params["gb_b3"])
    svd = cat_out * grid_out + bu + bi
    m = jnp.concatenate([cat_out, grid_out], axis=1)
    m = jnp.maximum(m @ params["mlp_w1"] + params["mlp_b1"], 0.0)
    m = jnp.maximum(m @ params["mlp_w2"] + params["mlp_b2"], 0.0)
    mlp_out = jax.nn.sigmoid(m @ params["mlp_w3"] + params["mlp_b3"])
    return jnp.concatenate([svd, mlp_out], axis=1) @ params["wn"]


if __name__ == "__main__":
    B, category_len, grid_len, K = 8, 16, 32, 16

    key = jax.random.PRNGKey(0)
    k_cat, k_grid, k_params = jax.random.split(key, 3)

    category_input = jax.random.normal(k_cat, (B, category_len), jnp.float32)
    grid_input = jax.random.normal(k_grid, (B, grid_len), jnp.float32)
    params = init_params(k_params, category_len, grid_len, K)
    packed = prepare_params(params)

    out = model_forward(category_input, grid_input, packed)
    out = jax.block_until_ready(out)

    ref = model_forward_ref(category_input, grid_input, params)
    assert out.shape == (B, 1)
    # bf16 tail-matmul operands (f32 accumulation) -> loose tolerance vs f32 ref.
    assert jnp.allclose(out, ref, atol=3e-2, rtol=3e-2), (
        f"max abs err {jnp.max(jnp.abs(out - ref))}")

    print("KERNEL_OK")
</pallas_src>

<mosaic_0001>
module attributes {stable_mosaic.version = 11 : i64} {
  func.func @_model_kernel(%arg0: i32, %arg1: memref<8x48xf32, #tpu.memory_space<vmem>>, %arg2: memref<48x640xf32, #tpu.memory_space<vmem>>, %arg3: memref<1x256xf32, #tpu.memory_space<vmem>>, %arg4: memref<256x128xbf16, #tpu.memory_space<vmem>>, %arg5: memref<1x128xf32, #tpu.memory_space<vmem>>, %arg6: memref<128x256xbf16, #tpu.memory_space<vmem>>, %arg7: memref<1x256xf32, #tpu.memory_space<vmem>>, %arg8: memref<8x384xbf16, #tpu.memory_space<vmem>>, %arg9: memref<1x1x8xf32, #tpu.memory_space<vmem>>) attributes {dimension_semantics = [#tpu.dimension_semantics<parallel>], iteration_bounds = array<i64: 1>, scalar_prefetch = 0 : i64, scratch_operands = 0 : i64, tpu.core_type = #tpu.core_type<tc>, window_params = [{transform_indices = @transform_0, window_bounds = array<i64: 8, 48>}, {pipeline_mode = #tpu.pipeline_mode<synchronous>, transform_indices = @transform_1, window_bounds = array<i64: 48, 640>}, {pipeline_mode = #tpu.pipeline_mode<synchronous>, transform_indices = @transform_2, window_bounds = array<i64: 1, 256>}, {pipeline_mode = #tpu.pipeline_mode<synchronous>, transform_indices = @transform_3, window_bounds = array<i64: 256, 128>}, {pipeline_mode = #tpu.pipeline_mode<synchronous>, transform_indices = @transform_4, window_bounds = array<i64: 1, 128>}, {pipeline_mode = #tpu.pipeline_mode<synchronous>, transform_indices = @transform_5, window_bounds = array<i64: 128, 256>}, {pipeline_mode = #tpu.pipeline_mode<synchronous>, transform_indices = @transform_6, window_bounds = array<i64: 1, 256>}, {pipeline_mode = #tpu.pipeline_mode<synchronous>, transform_indices = @transform_7, window_bounds = array<i64: 8, 384>}, {transform_indices = @transform_8, window_bounds = array<i64: 1, 1, 8>}]} {
    %c0 = arith.constant 0 : index
    %c0_0 = arith.constant 0 : index
    %0 = vector.load %arg1[%c0, %c0_0] : memref<8x48xf32, #tpu.memory_space<vmem>>, vector<8x48xf32>
    %c0_1 = arith.constant 0 : index
    %c0_2 = arith.constant 0 : index
    %1 = vector.load %arg2[%c0_1, %c0_2] : memref<48x640xf32, #tpu.memory_space<vmem>>, vector<48x640xf32>
    %cst = arith.constant dense<0.000000e+00> : vector<8x640xf32>
    %2 = tpu.matmul %0, %1, %cst {dimension_numbers = #tpu.dot_dimension_numbers<[1], [0], [0], [1], [0, 0, 1, 1], [], []>} : vector<8x48xf32>, vector<48x640xf32>, vector<8x640xf32> -> vector<8x640xf32>
    %3 = vector.extract_strided_slice %2 {offsets = [0, 0], sizes = [8, 128], strides = [1, 1]} : vector<8x640xf32> to vector<8x128xf32>
    %4 = vector.extract_strided_slice %2 {offsets = [0, 128], sizes = [8, 128], strides = [1, 1]} : vector<8x640xf32> to vector<8x128xf32>
    %5 = vector.extract_strided_slice %2 {offsets = [0, 256], sizes = [8, 128], strides = [1, 1]} : vector<8x640xf32> to vector<8x128xf32>
    %6 = vector.extract_strided_slice %2 {offsets = [0, 384], sizes = [8, 256], strides = [1, 1]} : vector<8x640xf32> to vector<8x256xf32>
    %c0_3 = arith.constant 0 : index
    %c0_4 = arith.constant 0 : index
    %7 = vector.load %arg3[%c0_3, %c0_4] : memref<1x256xf32, #tpu.memory_space<vmem>>, vector<1x256xf32>
    %8 = vector.broadcast %7 : vector<1x256xf32> to vector<8x256xf32>
    %9 = arith.addf %6, %8 : vector<8x256xf32>
    %cst_5 = arith.constant 0.000000e+00 : f32
    %10 = vector.broadcast %cst_5 : f32 to vector<8x256xf32>
    %11 = arith.maximumf %9, %10 : vector<8x256xf32>
    %12 = arith.truncf %11 : vector<8x256xf32> to vector<8x256xbf16>
    %c0_6 = arith.constant 0 : index
    %c0_7 = arith.constant 0 : index
    %13 = vector.load %arg4[%c0_6, %c0_7] : memref<256x128xbf16, #tpu.memory_space<vmem>>, vector<256x128xbf16>
    %cst_8 = arith.constant dense<0.000000e+00> : vector<8x128xf32>
    %14 = tpu.matmul %12, %13, %cst_8 {dimension_numbers = #tpu.dot_dimension_numbers<[1], [0], [0], [1], [0, 0, 1, 1], [], []>} : vector<8x256xbf16>, vector<256x128xbf16>, vector<8x128xf32> -> vector<8x128xf32>
    %c0_9 = arith.constant 0 : index
    %c0_10 = arith.constant 0 : index
    %15 = vector.load %arg5[%c0_9, %c0_10] : memref<1x128xf32, #tpu.memory_space<vmem>>, vector<1x128xf32>
    %16 = vector.broadcast %15 : vector<1x128xf32> to vector<8x128xf32>
    %17 = arith.addf %14, %16 : vector<8x128xf32>
    %cst_11 = arith.constant 0.000000e+00 : f32
    %18 = vector.broadcast %cst_11 : f32 to vector<8x128xf32>
    %19 = arith.maximumf %17, %18 : vector<8x128xf32>
    %20 = arith.truncf %19 : vector<8x128xf32> to vector<8x128xbf16>
    %c0_12 = arith.constant 0 : index
    %c0_13 = arith.constant 0 : index
    %21 = vector.load %arg6[%c0_12, %c0_13] : memref<128x256xbf16, #tpu.memory_space<vmem>>, vector<128x256xbf16>
    %cst_14 = arith.constant dense<0.000000e+00> : vector<8x256xf32>
    %22 = tpu.matmul %20, %21, %cst_14 {dimension_numbers = #tpu.dot_dimension_numbers<[1], [0], [0], [1], [0, 0, 1, 1], [], []>} : vector<8x128xbf16>, vector<128x256xbf16>, vector<8x256xf32> -> vector<8x256xf32>
    %c0_15 = arith.constant 0 : index
    %c0_16 = arith.constant 0 : index
    %23 = vector.load %arg7[%c0_15, %c0_16] : memref<1x256xf32, #tpu.memory_space<vmem>>, vector<1x256xf32>
    %24 = vector.broadcast %23 : vector<1x256xf32> to vector<8x256xf32>
    %25 = arith.addf %22, %24 : vector<8x256xf32>
    %26 = arith.negf %25 : vector<8x256xf32>
    %27 = math.exp %26 : vector<8x256xf32>
    %cst_17 = arith.constant 1.000000e+00 : f32
    %28 = vector.broadcast %cst_17 : f32 to vector<8x256xf32>
    %29 = arith.addf %28, %27 : vector<8x256xf32>
    %30 = arith.divf %28, %29 : vector<8x256xf32>
    %31 = arith.mulf %3, %4 : vector<8x128xf32>
    %32 = arith.addf %31, %5 : vector<8x128xf32>
    %c0_18 = arith.constant 0 : index
    %c0_19 = arith.constant 0 : index
    %33 = vector.load %arg8[%c0_18, %c0_19] : memref<8x384xbf16, #tpu.memory_space<vmem>>, vector<8x384xbf16>
    %34 = vector.extract_strided_slice %33 {offsets = [0, 0], sizes = [8, 128], strides = [1, 1]} : vector<8x384xbf16> to vector<8x128xbf16>
    %35 = arith.truncf %32 : vector<8x128xf32> to vector<8x128xbf16>
    %cst_20 = arith.constant dense<0.000000e+00> : vector<8x8xf32>
    %36 = tpu.matmul %34, %35, %cst_20 {dimension_numbers = #tpu.dot_dimension_numbers<[1], [1], [0], [0], [0, 0, 1, 0], [], []>} : vector<8x128xbf16>, vector<8x128xbf16>, vector<8x8xf32> -> vector<8x8xf32>
    %37 = vector.extract_strided_slice %33 {offsets = [0, 128], sizes = [8, 256], strides = [1, 1]} : vector<8x384xbf16> to vector<8x256xbf16>
    %38 = arith.truncf %30 : vector<8x256xf32> to vector<8x256xbf16>
    %cst_21 = arith.constant dense<0.000000e+00> : vector<8x8xf32>
    %39 = tpu.matmul %37, %38, %cst_21 {dimension_numbers = #tpu.dot_dimension_numbers<[1], [1], [0], [0], [0, 0, 1, 0], [], []>} : vector<8x256xbf16>, vector<8x256xbf16>, vector<8x8xf32> -> vector<8x8xf32>
    %40 = arith.addf %36, %39 : vector<8x8xf32>
    %41 = vector.extract_strided_slice %40 {offsets = [0, 0], sizes = [1, 8], strides = [1, 1]} : vector<8x8xf32> to vector<1x8xf32>
    %c0_22 = arith.constant 0 : index
    %c0_23 = arith.constant 0 : index
    %c0_24 = arith.constant 0 : index
    %42 = vector.load %arg9[%c0_22, %c0_23, %c0_24] : memref<1x1x8xf32, #tpu.memory_space<vmem>>, vector<1x1x8xf32>
    %43 = vector.shape_cast %42 : vector<1x1x8xf32> to vector<1x8xf32>
    %44 = vector.shape_cast %41 : vector<1x8xf32> to vector<1x1x8xf32>
    tpu.vector_store %arg9[%c0_22, %c0_23, %c0_24], %44 {strides = array<i32>} : memref<1x1x8xf32, #tpu.memory_space<vmem>>, vector<1x1x8xf32>,
    return
  }
  func.func @transform_0(%arg0: i32) -> (i32, i32) {
    %c0_i32 = arith.constant 0 : i32
    %c0_i32_0 = arith.constant 0 : i32
    return %arg0, %c0_i32 : i32, i32
  }
  func.func @transform_1(%arg0: i32) -> (i32, i32) {
    %c0_i32 = arith.constant 0 : i32
    %c0_i32_0 = arith.constant 0 : i32
    %c0_i32_1 = arith.constant 0 : i32
    return %c0_i32, %c0_i32_0 : i32, i32
  }
  func.func @transform_2(%arg0: i32) -> (i32, i32) {
    %c0_i32 = arith.constant 0 : i32
    %c0_i32_0 = arith.constant 0 : i32
    %c0_i32_1 = arith.constant 0 : i32
    return %c0_i32, %c0_i32_0 : i32, i32
  }
  func.func @transform_3(%arg0: i32) -> (i32, i32) {
    %c0_i32 = arith.constant 0 : i32
    %c0_i32_0 = arith.constant 0 : i32
    %c0_i32_1 = arith.constant 0 : i32
    return %c0_i32, %c0_i32_0 : i32, i32
  }
  func.func @transform_4(%arg0: i32) -> (i32, i32) {
    %c0_i32 = arith.constant 0 : i32
    %c0_i32_0 = arith.constant 0 : i32
    %c0_i32_1 = arith.constant 0 : i32
    return %c0_i32, %c0_i32_0 : i32, i32
  }
  func.func @transform_5(%arg0: i32) -> (i32, i32) {
    %c0_i32 = arith.constant 0 : i32
    %c0_i32_0 = arith.constant 0 : i32
    %c0_i32_1 = arith.constant 0 : i32
    return %c0_i32, %c0_i32_0 : i32, i32
  }
  func.func @transform_6(%arg0: i32) -> (i32, i32) {
    %c0_i32 = arith.constant 0 : i32
    %c0_i32_0 = arith.constant 0 : i32
    %c0_i32_1 = arith.constant 0 : i32
    return %c0_i32, %c0_i32_0 : i32, i32
  }
  func.func @transform_7(%arg0: i32) -> (i32, i32) {
    %c0_i32 = arith.constant 0 : i32
    %c0_i32_0 = arith.constant 0 : i32
    %c0_i32_1 = arith.constant 0 : i32
    return %c0_i32, %c0_i32_0 : i32, i32
  }
  func.func @transform_8(%arg0: i32) -> (i32, i32, i32) {
    %c0_i32 = arith.constant 0 : i32
    %c0_i32_0 = arith.constant 0 : i32
    %c0_i32_1 = arith.constant 0 : i32
    return %arg0, %c0_i32, %c0_i32_0 : i32, i32, i32
  }
}

</mosaic_0001>

<llo_original>
// kernel: tpu_custom_call.1
$region0: #{tpu_custom_call.1}
  #allocation0 [shape = 'u32[]', space=smem, size = 0x4, offset = 0x4, fixed_abs, tag = 'smem constant byte address 0x4 - core index']
  #allocation1 [shape = 'u32[144,128]{1,0:T(1,128)}', space=vmem, size = 0x12000, scoped, tag = 'internal scratch']
  %s0 = inlined_call_operand.hbm [shape: f32[8,48], index: 0, kind: input, shape index: {}]
  %s1 = inlined_call_operand.hbm [shape: f32[48,640], index: 1, kind: input, shape index: {}]
  %s2 = inlined_call_operand.vmem [shape: f32[1,256], index: 2, kind: input, shape index: {}]
  %s3 = inlined_call_operand.hbm [shape: bf16[256,128], index: 3, kind: input, shape index: {}]
  %s4 = inlined_call_operand.vmem [shape: f32[1,128], index: 4, kind: input, shape index: {}]
  %s5 = inlined_call_operand.hbm [shape: bf16[128,256], index: 5, kind: input, shape index: {}]
  %s6 = inlined_call_operand.vmem [shape: f32[1,256], index: 6, kind: input, shape index: {}]
  %s7 = inlined_call_operand.vmem [shape: bf16[8,384], index: 7, kind: input, shape index: {}]
  %s8 = inlined_call_operand.hbm [shape: f32[1,1,8], index: 8, kind: output, shape index: {}]
  %s9 = sld [smem:[#allocation0]]
  $region58: #{tpu_custom_call.1} parent=0
    _
  %s11 = ssub.s32 1, %s9
  %s12 = scalar_select 0, %s11, %s9
  $region1: #{tpu_custom_call.1} parent=0
    #allocation2 [shape = 'u8[4096]{0}', space=vmem, size = 0x1000, scoped, tag = 'input window, operand 0, single buffered']
    #allocation3 [shape = 's32[1]{0}', space=sflag, size = 0x4, scoped, tag = 'scoped memory for tpu_custom_call.1']
    #allocation4 [shape = 's32[1]{0}', space=sflag, size = 0x4, scoped, tag = 'scoped memory for tpu_custom_call.1']
    #allocation5 [shape = 'u8[122880]{0}', space=vmem, size = 0x1e000, scoped, tag = 'input window, operand 1, single buffered']
    #allocation6 [shape = 's32[1]{0}', space=sflag, size = 0x4, scoped, tag = 'scoped memory for tpu_custom_call.1']
    #allocation7 [shape = 'u8[65536]{0}', space=vmem, size = 0x10000, scoped, tag = 'input window, operand 3, single buffered']
    #allocation8 [shape = 'u8[65536]{0}', space=vmem, size = 0x10000, scoped, tag = 'input window, operand 5, single buffered']
    #allocation9 [shape = 's32[1]{0}', space=sflag, size = 0x4, scoped, tag = 'scoped memory for tpu_custom_call.1']
    #allocation10 [shape = 'u8[512]{0}', space=vmem, size = 0x400, scoped, tag = 'output window, operand 0, single buffered']
    %13 = vsyncpa [#allocation3], 0
    %14 = vsyncpa [#allocation6], 0
    %15 = vsyncpa [#allocation9], 0
    %16 = vsyncpa [#allocation4], 0
    // Predicated region
    $region2: #{tpu_custom_call.1} parent=1 // pred_check
      _
    $region3: #{tpu_custom_call.1} parent=1 // pred_check_branch
      %18 = sbr.rel (0) target = $region5
    $region4: #{tpu_custom_call.1} parent=1 // pred_region
      %s20 = ssub.s32 128, 128
      %21 = vsyncadd [#allocation3], %s20
      %s23 = sshll.u32 [#allocation2], 4
      %s24 = int_to_ptr.vmem [resolvable:$true] %s23
      %26 = dma.hbm_to_vmem [thread:$0]  %s0, 128, %s24, [#allocation3]
    $region5: #{tpu_custom_call.1} parent=1 // pred_fallthru
      _
    // Predicated region
    $region6: #{tpu_custom_call.1} parent=1 // pred_check
      _
    $region7: #{tpu_custom_call.1} parent=1 // pred_check_branch
      %28 = sbr.rel (0) target = $region9
    $region8: #{tpu_custom_call.1} parent=1 // pred_region
      %s30 = ssub.s32 3840, 3840
      %31 = vsyncadd [#allocation6], %s30
      %s32 = sshll.u32 [#allocation5], 4
      %s33 = int_to_ptr.vmem [resolvable:$true] %s32
      %38 = dma.hbm_to_vmem [thread:$0]  %s1, 3840, %s33, [#allocation6], 640, 640, 40
    $region9: #{tpu_custom_call.1} parent=1 // pred_fallthru
      _
    // Predicated region
    $region10: #{tpu_custom_call.1} parent=1 // pred_check
      _
    $region11: #{tpu_custom_call.1} parent=1 // pred_check_branch
      %40 = sbr.rel (0) target = $region13
    $region12: #{tpu_custom_call.1} parent=1 // pred_region
      _
    $region13: #{tpu_custom_call.1} parent=1 // pred_fallthru
      _
    // Predicated region
    $region14: #{tpu_custom_call.1} parent=1 // pred_check
      _
    $region15: #{tpu_custom_call.1} parent=1 // pred_check_branch
      %42 = sbr.rel (0) target = $region17
    $region16: #{tpu_custom_call.1} parent=1 // pred_region
      %s44 = ssub.s32 2048, 2048
      %45 = vsyncadd [#allocation6], %s44
      %s46 = sshll.u32 [#allocation7], 4
      %s47 = int_to_ptr.vmem [resolvable:$true] %s46
      %52 = dma.hbm_to_vmem [thread:$0]  %s3, 2048, %s47, [#allocation6], 64, 64, 4
    $region17: #{tpu_custom_call.1} parent=1 // pred_fallthru
      _
    // Predicated region
    $region18: #{tpu_custom_call.1} parent=1 // pred_check
      _
    $region19: #{tpu_custom_call.1} parent=1 // pred_check_branch
      %54 = sbr.rel (0) target = $region21
    $region20: #{tpu_custom_call.1} parent=1 // pred_region
      _
    $region21: #{tpu_custom_call.1} parent=1 // pred_fallthru
      _
    // Predicated region
    $region22: #{tpu_custom_call.1} parent=1 // pred_check
      _
    $region23: #{tpu_custom_call.1} parent=1 // pred_check_branch
      %56 = sbr.rel (0) target = $region25
    $region24: #{tpu_custom_call.1} parent=1 // pred_region
      %s58 = ssub.s32 2048, 2048
      %59 = vsyncadd [#allocation9], %s58
      %s60 = sshll.u32 [#allocation8], 4
      %s61 = int_to_ptr.vmem [resolvable:$true] %s60
      %66 = dma.hbm_to_vmem [thread:$0]  %s5, 2048, %s61, [#allocation9], 128, 128, 8
    $region25: #{tpu_custom_call.1} parent=1 // pred_fallthru
      _
    // Predicated region
    $region26: #{tpu_custom_call.1} parent=1 // pred_check
      _
    $region27: #{tpu_custom_call.1} parent=1 // pred_check_branch
      %68 = sbr.rel (0) target = $region29
    $region28: #{tpu_custom_call.1} parent=1 // pred_region
      _
    $region29: #{tpu_custom_call.1} parent=1 // pred_fallthru
      _
    // Predicated region
    $region30: #{tpu_custom_call.1} parent=1 // pred_check
      _
    $region31: #{tpu_custom_call.1} parent=1 // pred_check_branch
      %70 = sbr.rel (0) target = $region33
    $region32: #{tpu_custom_call.1} parent=1 // pred_region
      _
    $region33: #{tpu_custom_call.1} parent=1 // pred_fallthru
      _
    // Predicated region
    $region34: #{tpu_custom_call.1} parent=1 // pred_check
      _
    $region35: #{tpu_custom_call.1} parent=1 // pred_check_branch
      %72 = sbr.rel (0) target = $region37
    $region36: #{tpu_custom_call.1} parent=1 // pred_region
      %73 = dma.done [#allocation3], 128
    $region37: #{tpu_custom_call.1} parent=1 // pred_fallthru
      _
    // Predicated region
    $region38: #{tpu_custom_call.1} parent=1 // pred_check
      _
    $region39: #{tpu_custom_call.1} parent=1 // pred_check_branch
      %75 = sbr.rel (0) target = $region41
    $region40: #{tpu_custom_call.1} parent=1 // pred_region
      %76 = dma.done [#allocation6], 3840
    $region41: #{tpu_custom_call.1} parent=1 // pred_fallthru
      _
    // Predicated region
    $region42: #{tpu_custom_call.1} parent=1 // pred_check
      _
    $region43: #{tpu_custom_call.1} parent=1 // pred_check_branch
      %78 = sbr.rel (0) target = $region45
    $region44: #{tpu_custom_call.1} parent=1 // pred_region
      %79 = dma.done [#allocation6], 2048
    $region45: #{tpu_custom_call.1} parent=1 // pred_fallthru
      _
    // Predicated region
    $region46: #{tpu_custom_call.1} parent=1 // pred_check
      _
    $region47: #{tpu_custom_call.1} parent=1 // pred_check_branch
      %81 = sbr.rel (0) target = $region49
    $region48: #{tpu_custom_call.1} parent=1 // pred_region
      %82 = dma.done [#allocation9], 2048
    $region49: #{tpu_custom_call.1} parent=1 // pred_fallthru
      _
    %v84 = vld [vmem:[#allocation2] sm:$0xff]
    %v85 = vld [vmem:[#allocation5] sm:$0xff]
    %v86 = vld [vmem:[#allocation5 + $0x8] sm:$0xff]
    %v87 = vld [vmem:[#allocation5 + $0x10] sm:$0xff]
    %v88 = vld [vmem:[#allocation5 + $0x18] sm:$0xff]
    %v89 = vld [vmem:[#allocation5 + $0x20] sm:$0xff]
    %v90 = vld [vmem:[#allocation5 + $0x28] sm:$0xff]
    %v91 = vld [vmem:[#allocation5 + $0x30] sm:$0xff]
    %v92 = vld [vmem:[#allocation5 + $0x38] sm:$0xff]
    %v93 = vld [vmem:[#allocation5 + $0x40] sm:$0xff]
    %v94 = vld [vmem:[#allocation5 + $0x48] sm:$0xff]
    %v95 = vld [vmem:[#allocation5 + $0x50] sm:$0xff]
    %v96 = vld [vmem:[#allocation5 + $0x58] sm:$0xff]
    %v97 = vld [vmem:[#allocation5 + $0x60] sm:$0xff]
    %v98 = vld [vmem:[#allocation5 + $0x68] sm:$0xff]
    %v99 = vld [vmem:[#allocation5 + $0x70] sm:$0xff]
    %v100 = vld [vmem:[#allocation5 + $0x78] sm:$0xff]
    %v101 = vld [vmem:[#allocation5 + $0x80] sm:$0xff]
    %v102 = vld [vmem:[#allocation5 + $0x88] sm:$0xff]
    %v103 = vld [vmem:[#allocation5 + $0x90] sm:$0xff]
    %v104 = vld [vmem:[#allocation5 + $0x98] sm:$0xff]
    %v105 = vld [vmem:[#allocation5 + $0xa0] sm:$0xff]
    %v106 = vld [vmem:[#allocation5 + $0xa8] sm:$0xff]
    %v107 = vld [vmem:[#allocation5 + $0xb0] sm:$0xff]
    %v108 = vld [vmem:[#allocation5 + $0xb8] sm:$0xff]
    %v109 = vld [vmem:[#allocation5 + $0xc0] sm:$0xff]
    %v110 = vld [vmem:[#allocation5 + $0xc8] sm:$0xff]
    %v111 = vld [vmem:[#allocation5 + $0xd0] sm:$0xff]
    %v112 = vld [vmem:[#allocation5 + $0xd8] sm:$0xff]
    %v113 = vld [vmem:[#allocation5 + $0xe0] sm:$0xff]
    %v114 = vld [vmem:[#allocation5 + $0xe8] sm:$0xff]
    %vm115 = vcmask 392192
    %v117 = vsel %vm115, %v84, 0
    %119 = vmatprep.subr.mxu0 %v86
    %120 = vmatpush1.msra.mxu0 %v85
    %121 = vmatprep.subr.mxu0 %v91
    %122 = vmatpush1.msra.mxu0 %v90
    %123 = vmatprep.subr.mxu0 %v96
    %124 = vmatpush1.msra.mxu0 %v95
    %125 = vmatprep.subr.mxu0 %v101
    %126 = vmatpush1.msra.mxu0 %v100
    %127 = vmatprep.subr.mxu0 %v106
    %128 = vmatpush1.msra.mxu0 %v105
    %129 = vmatprep.subr.mxu0 %v111
    %130 = vmatpush1.msra.mxu0 %v110
    %131 = vmatprep.subr.mxu0 0.0
    %132 = vmatpush1.msra.mxu0 0.0
    %133 = vmatprep.subr.mxu0 0.0
    %134 = vmatpush1.msra.mxu0 0.0
    %135 = vmatprep.subr.mxu0 0.0
    %136 = vmatpush1.msra.mxu0 0.0
    %137 = vmatprep.subr.mxu0 0.0
    %138 = vmatpush1.msra.mxu0 0.0
    %139 = vmatprep.subr.mxu0 0.0
    %140 = vmatpush1.msra.mxu0 0.0
    %141 = vmatprep.subr.mxu0 0.0
    %142 = vmatpush1.msra.mxu0 0.0
    %143 = vmatprep.subr.mxu0 0.0
    %144 = vmatpush1.msra.mxu0 0.0
    %145 = vmatprep.subr.mxu0 0.0
    %146 = vmatpush1.msra.mxu0 0.0
    %147 = vmatprep.subr.mxu0 0.0
    %148 = vmatpush1.msra.mxu0 0.0
    %149 = vmatprep.subr.mxu0 0.0
    %150 = vmatpush1.msra.mxu0 0.0
    %151 = vmatprep.subr.mxu0 0.0
    %152 = vmatpush1.msra.mxu0 0.0
    %153 = vmatprep.subr.mxu0 0.0
    %154 = vmatpush1.msra.mxu0 0.0
    %155 = vmatprep.subr.mxu0 0.0
    %156 = vmatpush1.msra.mxu0 0.0
    %157 = vmatprep.subr.mxu0 0.0
    %158 = vmatpush1.msra.mxu0 0.0
    %159 = vmatprep.subr.mxu0 0.0
    %160 = vmatpush1.msra.mxu0 0.0
    %161 = vmatprep.subr.mxu0 0.0
    %162 = vmatpush1.msra.mxu0 0.0
    %163 = vmatprep.subr.mxu0 0.0
    %164 = vmatpush1.msra.mxu0 0.0
    %165 = vmatprep.subr.mxu0 0.0
    %166 = vmatpush1.msra.mxu0 0.0
    %167 = vmatprep.subr.mxu0 0.0
    %168 = vmatpush1.msra.mxu0 0.0
    %169 = vmatprep.subr.mxu0 0.0
    %170 = vmatpush1.msra.mxu0 0.0
    %171 = vmatprep.subr.mxu0 0.0
    %172 = vmatpush1.msra.mxu0 0.0
    %173 = vmatprep.subr.mxu0 0.0
    %174 = vmatpush1.msra.mxu0 0.0
    %175 = vmatprep.subr.mxu0 0.0
    %176 = vmatpush1.msra.mxu0 0.0
    %177 = vmatprep.subr.mxu0 0.0
    %178 = vmatpush1.msra.mxu0 0.0
    %179 = vmatprep.subr.mxu0 0.0
    %180 = vmatpush1.msra.mxu0 0.0
    %181 = vmatprep.subr.mxu0 0.0
    %182 = vmatpush1.msra.mxu0 0.0
    %183 = vmatprep.mubr.f32.mxu0 0.0
    %184 = vmatmul.mubr.f32.gmra.mrb[0].mxu0 %v117
    %v185 = vpop.f32.mrb[0].mxu0
    %v186 = vadd.f32 0.0, %v185
    %v187 = vpop.f32.mrb[0].mxu0
    %v188 = vadd.f32 0.0, %v187
    %189 = vdwg.mxu0
    %190 = vmatprep.subr.mxu0 %v88
    %191 = vmatpush1.msra.mxu0 %v87
    %192 = vmatprep.subr.mxu0 %v93
    %193 = vmatpush1.msra.mxu0 %v92
    %194 = vmatprep.subr.mxu0 %v98
    %195 = vmatpush1.msra.mxu0 %v97
    %196 = vmatprep.subr.mxu0 %v103
    %197 = vmatpush1.msra.mxu0 %v102
    %198 = vmatprep.subr.mxu0 %v108
    %199 = vmatpush1.msra.mxu0 %v107
    %200 = vmatprep.subr.mxu0 %v113
    %201 = vmatpush1.msra.mxu0 %v112
    %202 = vmatprep.subr.mxu0 0.0
    %203 = vmatpush1.msra.mxu0 0.0
    %204 = vmatprep.subr.mxu0 0.0
    %205 = vmatpush1.msra.mxu0 0.0
    %206 = vmatprep.subr.mxu0 0.0
    %207 = vmatpush1.msra.mxu0 0.0
    %208 = vmatprep.subr.mxu0 0.0
    %209 = vmatpush1.msra.mxu0 0.0
    %210 = vmatprep.subr.mxu0 0.0
    %211 = vmatpush1.msra.mxu0 0.0
    %212 = vmatprep.subr.mxu0 0.0
    %213 = vmatpush1.msra.mxu0 0.0
    %214 = vmatprep.subr.mxu0 0.0
    %215 = vmatpush1.msra.mxu0 0.0
    %216 = vmatprep.subr.mxu0 0.0
    %217 = vmatpush1.msra.mxu0 0.0
    %218 = vmatprep.subr.mxu0 0.0
    %219 = vmatpush1.msra.mxu0 0.0
    %220 = vmatprep.subr.mxu0 0.0
    %221 = vmatpush1.msra.mxu0 0.0
    %222 = vmatprep.subr.mxu0 0.0
    %223 = vmatpush1.msra.mxu0 0.0
    %224 = vmatprep.subr.mxu0 0.0
    %225 = vmatpush1.msra.mxu0 0.0
    %226 = vmatprep.subr.mxu0 0.0
    %227 = vmatpush1.msra.mxu0 0.0
    %228 = vmatprep.subr.mxu0 0.0
    %229 = vmatpush1.msra.mxu0 0.0
    %230 = vmatprep.subr.mxu0 0.0
    %231 = vmatpush1.msra.mxu0 0.0
    %232 = vmatprep.subr.mxu0 0.0
    %233 = vmatpush1.msra.mxu0 0.0
    %234 = vmatprep.subr.mxu0 0.0
    %235 = vmatpush1.msra.mxu0 0.0
    %236 = vmatprep.subr.mxu0 0.0
    %237 = vmatpush1.msra.mxu0 0.0
    %238 = vmatprep.subr.mxu0 0.0
    %239 = vmatpush1.msra.mxu0 0.0
    %240 = vmatprep.subr.mxu0 0.0
    %241 = vmatpush1.msra.mxu0 0.0
    %242 = vmatprep.subr.mxu0 0.0
    %243 = vmatpush1.msra.mxu0 0.0
    %244 = vmatprep.subr.mxu0 0.0
    %245 = vmatpush1.msra.mxu0 0.0
    %246 = vmatprep.subr.mxu0 0.0
    %247 = vmatpush1.msra.mxu0 0.0
    %248 = vmatprep.subr.mxu0 0.0
    %249 = vmatpush1.msra.mxu0 0.0
    %250 = vmatprep.subr.mxu0 0.0
    %251 = vmatpush1.msra.mxu0 0.0
    %252 = vmatprep.subr.mxu0 0.0
    %253 = vmatpush1.msra.mxu0 0.0
    %254 = vmatprep.mubr.f32.mxu0 0.0
    %255 = vmatmul.mubr.f32.gmra.mrb[0].mxu0 %v117
    %v256 = vpop.f32.mrb[0].mxu0
    %v257 = vadd.f32 0.0, %v256
    %v258 = vpop.f32.mrb[0].mxu0
    %v259 = vadd.f32 0.0, %v258
    %260 = vdwg.mxu0
    %261 = vmatprep.subr.mxu0 0.0
    %262 = vmatpush1.msra.mxu0 %v89
    %263 = vmatprep.subr.mxu0 0.0
    %264 = vmatpush1.msra.mxu0 %v94
    %265 = vmatprep.subr.mxu0 0.0
    %266 = vmatpush1.msra.mxu0 %v99
    %267 = vmatprep.subr.mxu0 0.0
    %268 = vmatpush1.msra.mxu0 %v104
    %269 = vmatprep.subr.mxu0 0.0
    %270 = vmatpush1.msra.mxu0 %v109
    %271 = vmatprep.subr.mxu0 0.0
    %272 = vmatpush1.msra.mxu0 %v114
    %273 = vmatprep.subr.mxu0 0.0
    %274 = vmatpush1.msra.mxu0 0.0
    %275 = vmatprep.subr.mxu0 0.0
    %276 = vmatpush1.msra.mxu0 0.0
    %277 = vmatprep.subr.mxu0 0.0
    %278 = vmatpush1.msra.mxu0 0.0
    %279 = vmatprep.subr.mxu0 0.0
    %280 = vmatpush1.msra.mxu0 0.0
    %281 = vmatprep.subr.mxu0 0.0
    %282 = vmatpush1.msra.mxu0 0.0
    %283 = vmatprep.subr.mxu0 0.0
    %284 = vmatpush1.msra.mxu0 0.0
    %285 = vmatprep.subr.mxu0 0.0
    %286 = vmatpush1.msra.mxu0 0.0
    %287 = vmatprep.subr.mxu0 0.0
    %288 = vmatpush1.msra.mxu0 0.0
    %289 = vmatprep.subr.mxu0 0.0
    %290 = vmatpush1.msra.mxu0 0.0
    %291 = vmatprep.subr.mxu0 0.0
    %292 = vmatpush1.msra.mxu0 0.0
    %293 = vmatprep.subr.mxu0 0.0
    %294 = vmatpush1.msra.mxu0 0.0
    %295 = vmatprep.subr.mxu0 0.0
    %296 = vmatpush1.msra.mxu0 0.0
    %297 = vmatprep.subr.mxu0 0.0
    %298 = vmatpush1.msra.mxu0 0.0
    %299 = vmatprep.subr.mxu0 0.0
    %300 = vmatpush1.msra.mxu0 0.0
    %301 = vmatprep.subr.mxu0 0.0
    %302 = vmatpush1.msra.mxu0 0.0
    %303 = vmatprep.subr.mxu0 0.0
    %304 = vmatpush1.msra.mxu0 0.0
    %305 = vmatprep.subr.mxu0 0.0
    %306 = vmatpush1.msra.mxu0 0.0
    %307 = vmatprep.subr.mxu0 0.0
    %308 = vmatpush1.msra.mxu0 0.0
    %309 = vmatprep.subr.mxu0 0.0
    %310 = vmatpush1.msra.mxu0 0.0
    %311 = vmatprep.subr.mxu0 0.0
    %312 = vmatpush1.msra.mxu0 0.0
    %313 = vmatprep.subr.mxu0 0.0
    %314 = vmatpush1.msra.mxu0 0.0
    %315 = vmatprep.subr.mxu0 0.0
    %316 = vmatpush1.msra.mxu0 0.0
    %317 = vmatprep.subr.mxu0 0.0
    %318 = vmatpush1.msra.mxu0 0.0
    %319 = vmatprep.subr.mxu0 0.0
    %320 = vmatpush1.msra.mxu0 0.0
    %321 = vmatprep.subr.mxu0 0.0
    %322 = vmatpush1.msra.mxu0 0.0
    %323 = vmatprep.subr.mxu0 0.0
    %324 = vmatpush1.msra.mxu0 0.0
    %325 = vmatprep.mubr.f32.mxu0 0.0
    %326 = vmatmul.mubr.f32.gmra.mrb[0].mxu0 %v117
    %v327 = vpop.f32.mrb[0].mxu0
    %v328 = vadd.f32 0.0, %v327
    %v329 = vpop.f32.mrb[0].mxu0
    %330 = vdwg.mxu0
    %v331 = vld [vmem:[%s2] sm:$0x3]
    %v333 = vlaneseq
    %v334 = vshrl.u32 %v333, 7
    %v335 = vsub.s32 0, %v334
    %v336 = vrot.slane %v331, %v335
    %v337 = vlaneseq
    %v338 = vshrl.u32 %v337, 7
    %v339 = vsub.s32 1, %v338
    %v340 = vrot.slane %v331, %v339
    %v343 = vadd.f32 %v259, %v336
    %v344 = vadd.f32 %v328, %v340
    %v345 = vmax.f32 %v343, 0.0
    %v346 = vmax.f32 %v344, 0.0
    %v347 = vpack.c.bf16 %v345, %v345
    %v348 = vpack.c.bf16 %v346, %v346
    %v349 = vld [vmem:[#allocation7] sm:$0xf]
    %v350 = vld [vmem:[#allocation7 + $0x4] sm:$0xf]
    %v351 = vld [vmem:[#allocation7 + $0x8] sm:$0xf]
    %v352 = vld [vmem:[#allocation7 + $0xc] sm:$0xf]
    %v353 = vld [vmem:[#allocation7 + $0x10] sm:$0xf]
    %v354 = vld [vmem:[#allocation7 + $0x14] sm:$0xf]
    %v355 = vld [vmem:[#allocation7 + $0x18] sm:$0xf]
    %v356 = vld [vmem:[#allocation7 + $0x1c] sm:$0xf]
    %v357 = vld [vmem:[#allocation7 + $0x20] sm:$0xf]
    %v358 = vld [vmem:[#allocation7 + $0x24] sm:$0xf]
    %v359 = vld [vmem:[#allocation7 + $0x28] sm:$0xf]
    %v360 = vld [vmem:[#allocation7 + $0x2c] sm:$0xf]
    %v361 = vld [vmem:[#allocation7 + $0x30] sm:$0xf]
    %v362 = vld [vmem:[#allocation7 + $0x34] sm:$0xf]
    %v363 = vld [vmem:[#allocation7 + $0x38] sm:$0xf]
    %v364 = vld [vmem:[#allocation7 + $0x3c] sm:$0xf]
    %v365 = vld [vmem:[#allocation7 + $0x40] sm:$0xf]
    %v366 = vld [vmem:[#allocation7 + $0x44] sm:$0xf]
    %v367 = vld [vmem:[#allocation7 + $0x48] sm:$0xf]
    %v368 = vld [vmem:[#allocation7 + $0x4c] sm:$0xf]
    %v369 = vld [vmem:[#allocation7 + $0x50] sm:$0xf]
    %v370 = vld [vmem:[#allocation7 + $0x54] sm:$0xf]
    %v371 = vld [vmem:[#allocation7 + $0x58] sm:$0xf]
    %v372 = vld [vmem:[#allocation7 + $0x5c] sm:$0xf]
    %v373 = vld [vmem:[#allocation7 + $0x60] sm:$0xf]
    %v374 = vld [vmem:[#allocation7 + $0x64] sm:$0xf]
    %v375 = vld [vmem:[#allocation7 + $0x68] sm:$0xf]
    %v376 = vld [vmem:[#allocation7 + $0x6c] sm:$0xf]
    %v377 = vld [vmem:[#allocation7 + $0x70] sm:$0xf]
    %v378 = vld [vmem:[#allocation7 + $0x74] sm:$0xf]
    %v379 = vld [vmem:[#allocation7 + $0x78] sm:$0xf]
    %v380 = vld [vmem:[#allocation7 + $0x7c] sm:$0xf]
    %v381 = vld [vmem:[%s4] sm:$0x1]
    %v383 = vlaneseq
    %v384 = vshrl.u32 %v383, 7
    %v385 = vsub.s32 0, %v384
    %v386 = vrot.slane %v381, %v385
    %v420 = vunpack.c.l.b16 %v349
    %v421 = vunpack.c.l.b16 %v350
    %v422 = vunpack.c.l.b16 %v351
    %v423 = vunpack.c.l.b16 %v352
    %v424 = vunpack.c.l.b16 %v353
    %v425 = vunpack.c.l.b16 %v354
    %v426 = vunpack.c.l.b16 %v355
    %v427 = vunpack.c.l.b16 %v356
    %v428 = vunpack.c.l.b16 %v357
    %v429 = vunpack.c.l.b16 %v358
    %v430 = vunpack.c.l.b16 %v359
    %v431 = vunpack.c.l.b16 %v360
    %v432 = vunpack.c.l.b16 %v361
    %v433 = vunpack.c.l.b16 %v362
    %v434 = vunpack.c.l.b16 %v363
    %v435 = vunpack.c.l.b16 %v364
    %v436 = vunpack.c.l.b16 %v365
    %v437 = vunpack.c.l.b16 %v366
    %v438 = vunpack.c.l.b16 %v367
    %v439 = vunpack.c.l.b16 %v368
    %v440 = vunpack.c.l.b16 %v369
    %v441 = vunpack.c.l.b16 %v370
    %v442 = vunpack.c.l.b16 %v371
    %v443 = vunpack.c.l.b16 %v372
    %v444 = vunpack.c.l.b16 %v373
    %v445 = vunpack.c.l.b16 %v374
    %v446 = vunpack.c.l.b16 %v375
    %v447 = vunpack.c.l.b16 %v376
    %v448 = vunpack.c.l.b16 %v377
    %v449 = vunpack.c.l.b16 %v378
    %v450 = vunpack.c.l.b16 %v379
    %v451 = vunpack.c.l.b16 %v380
    %v452 = vpack.c.b16 %v421, %v420
    %v453 = vpack.c.b16 %v423, %v422
    %v454 = vpack.c.b16 %v425, %v424
    %v455 = vpack.c.b16 %v427, %v426
    %v456 = vpack.c.b16 %v429, %v428
    %v457 = vpack.c.b16 %v431, %v430
    %v458 = vpack.c.b16 %v433, %v432
    %v459 = vpack.c.b16 %v435, %v434
    %v460 = vpack.c.b16 %v437, %v436
    %v461 = vpack.c.b16 %v439, %v438
    %v462 = vpack.c.b16 %v441, %v440
    %v463 = vpack.c.b16 %v443, %v442
    %v464 = vpack.c.b16 %v445, %v444
    %v465 = vpack.c.b16 %v447, %v446
    %v466 = vpack.c.b16 %v449, %v448
    %v467 = vpack.c.b16 %v451, %v450
    %484 = vmatprep.subr.bf16.mxu0 0
    %485 = vmatpush1.bf16.msra.mxu0 %v452
    %486 = vmatprep.subr.bf16.mxu0 0
    %487 = vmatpush1.bf16.msra.mxu0 %v453
    %488 = vmatprep.subr.bf16.mxu0 0
    %489 = vmatpush1.bf16.msra.mxu0 %v454
    %490 = vmatprep.subr.bf16.mxu0 0
    %491 = vmatpush1.bf16.msra.mxu0 %v455
    %492 = vmatprep.subr.bf16.mxu0 0
    %493 = vmatpush1.bf16.msra.mxu0 %v456
    %494 = vmatprep.subr.bf16.mxu0 0
    %495 = vmatpush1.bf16.msra.mxu0 %v457
    %496 = vmatprep.subr.bf16.mxu0 0
    %497 = vmatpush1.bf16.msra.mxu0 %v458
    %498 = vmatprep.subr.bf16.mxu0 0
    %499 = vmatpush1.bf16.msra.mxu0 %v459
    %500 = vmatprep.subr.bf16.mxu0 0
    %501 = vmatpush1.bf16.msra.mxu0 %v460
    %502 = vmatprep.subr.bf16.mxu0 0
    %503 = vmatpush1.bf16.msra.mxu0 %v461
    %504 = vmatprep.subr.bf16.mxu0 0
    %505 = vmatpush1.bf16.msra.mxu0 %v462
    %506 = vmatprep.subr.bf16.mxu0 0
    %507 = vmatpush1.bf16.msra.mxu0 %v463
    %508 = vmatprep.subr.bf16.mxu0 0
    %509 = vmatpush1.bf16.msra.mxu0 %v464
    %510 = vmatprep.subr.bf16.mxu0 0
    %511 = vmatpush1.bf16.msra.mxu0 %v465
    %512 = vmatprep.subr.bf16.mxu0 0
    %513 = vmatpush1.bf16.msra.mxu0 %v466
    %514 = vmatprep.subr.bf16.mxu0 0
    %515 = vmatpush1.bf16.msra.mxu0 %v467
    %516 = vmatprep.mubr.bf16.mxu0 %v348
    %517 = vmatmul.mubr.bf16.gmra.mrb[0].mxu0 %v347
    %v518 = vpop.f32.mrb[0].mxu0
    %v519 = vadd.f32 %v386, %v518
    %v520 = vpop.f32.mrb[0].mxu0
    %v521 = vpop.f32.mrb[0].mxu0
    %v522 = vpop.f32.mrb[0].mxu0
    %523 = vdwg.mxu0
    %v524 = vmax.f32 %v519, 0.0
    %v525 = vpack.c.bf16 %v524, %v524
    %v526 = vld [vmem:[#allocation8] sm:$0xff]
    %v527 = vld [vmem:[#allocation8 + $0x8] sm:$0xff]
    %v528 = vld [vmem:[#allocation8 + $0x10] sm:$0xff]
    %v529 = vld [vmem:[#allocation8 + $0x18] sm:$0xff]
    %v530 = vld [vmem:[#allocation8 + $0x20] sm:$0xff]
    %v531 = vld [vmem:[#allocation8 + $0x28] sm:$0xff]
    %v532 = vld [vmem:[#allocation8 + $0x30] sm:$0xff]
    %v533 = vld [vmem:[#allocation8 + $0x38] sm:$0xff]
    %v534 = vld [vmem:[#allocation8 + $0x40] sm:$0xff]
    %v535 = vld [vmem:[#allocation8 + $0x48] sm:$0xff]
    %v536 = vld [vmem:[#allocation8 + $0x50] sm:$0xff]
    %v537 = vld [vmem:[#allocation8 + $0x58] sm:$0xff]
    %v538 = vld [vmem:[#allocation8 + $0x60] sm:$0xff]
    %v539 = vld [vmem:[#allocation8 + $0x68] sm:$0xff]
    %v540 = vld [vmem:[#allocation8 + $0x70] sm:$0xff]
    %v541 = vld [vmem:[#allocation8 + $0x78] sm:$0xff]
    %v542 = vld [vmem:[%s6] sm:$0x3]
    %v544 = vlaneseq
    %v545 = vshrl.u32 %v544, 7
    %v546 = vsub.s32 0, %v545
    %v547 = vrot.slane %v542, %v546
    %v548 = vlaneseq
    %v549 = vshrl.u32 %v548, 7
    %v550 = vsub.s32 1, %v549
    %v551 = vrot.slane %v542, %v550
    %v570 = vunpack.c.l.b16 %v526
    %v571 = vunpack.c.h.b16 %v526
    %v572 = vunpack.c.l.b16 %v527
    %v573 = vunpack.c.h.b16 %v527
    %v574 = vunpack.c.l.b16 %v528
    %v575 = vunpack.c.h.b16 %v528
    %v576 = vunpack.c.l.b16 %v529
    %v577 = vunpack.c.h.b16 %v529
    %v578 = vunpack.c.l.b16 %v530
    %v579 = vunpack.c.h.b16 %v530
    %v580 = vunpack.c.l.b16 %v531
    %v581 = vunpack.c.h.b16 %v531
    %v582 = vunpack.c.l.b16 %v532
    %v583 = vunpack.c.h.b16 %v532
    %v584 = vunpack.c.l.b16 %v533
    %v585 = vunpack.c.h.b16 %v533
    %v586 = vunpack.c.l.b16 %v534
    %v587 = vunpack.c.h.b16 %v534
    %v588 = vunpack.c.l.b16 %v535
    %v589 = vunpack.c.h.b16 %v535
    %v590 = vunpack.c.l.b16 %v536
    %v591 = vunpack.c.h.b16 %v536
    %v592 = vunpack.c.l.b16 %v537
    %v593 = vunpack.c.h.b16 %v537
    %v594 = vunpack.c.l.b16 %v538
    %v595 = vunpack.c.h.b16 %v538
    %v596 = vunpack.c.l.b16 %v539
    %v597 = vunpack.c.h.b16 %v539
    %v598 = vunpack.c.l.b16 %v540
    %v599 = vunpack.c.h.b16 %v540
    %v600 = vunpack.c.l.b16 %v541
    %v601 = vunpack.c.h.b16 %v541
    %v602 = vpack.c.b16 %v572, %v570
    %v603 = vpack.c.b16 %v573, %v571
    %v604 = vpack.c.b16 %v576, %v574
    %v605 = vpack.c.b16 %v577, %v575
    %v606 = vpack.c.b16 %v580, %v578
    %v607 = vpack.c.b16 %v581, %v579
    %v608 = vpack.c.b16 %v584, %v582
    %v609 = vpack.c.b16 %v585, %v583
    %v610 = vpack.c.b16 %v588, %v586
    %v611 = vpack.c.b16 %v589, %v587
    %v612 = vpack.c.b16 %v592, %v590
    %v613 = vpack.c.b16 %v593, %v591
    %v614 = vpack.c.b16 %v596, %v594
    %v615 = vpack.c.b16 %v597, %v595
    %v616 = vpack.c.b16 %v600, %v598
    %v617 = vpack.c.b16 %v601, %v599
    %634 = vmatprep.subr.bf16.mxu0 %v603
    %635 = vmatpush1.bf16.msra.mxu0 %v602
    %636 = vmatprep.subr.bf16.mxu0 %v605
    %637 = vmatpush1.bf16.msra.mxu0 %v604
    %638 = vmatprep.subr.bf16.mxu0 %v607
    %639 = vmatpush1.bf16.msra.mxu0 %v606
    %640 = vmatprep.subr.bf16.mxu0 %v609
    %641 = vmatpush1.bf16.msra.mxu0 %v608
    %642 = vmatprep.subr.bf16.mxu0 %v611
    %643 = vmatpush1.bf16.msra.mxu0 %v610
    %644 = vmatprep.subr.bf16.mxu0 %v613
    %645 = vmatpush1.bf16.msra.mxu0 %v612
    %646 = vmatprep.subr.bf16.mxu0 %v615
    %647 = vmatpush1.bf16.msra.mxu0 %v614
    %648 = vmatprep.subr.bf16.mxu0 %v617
    %649 = vmatpush1.bf16.msra.mxu0 %v616
    %650 = vmatprep.subr.bf16.mxu0 0
    %651 = vmatpush1.bf16.msra.mxu0 0
    %652 = vmatprep.subr.bf16.mxu0 0
    %653 = vmatpush1.bf16.msra.mxu0 0
    %654 = vmatprep.subr.bf16.mxu0 0
    %655 = vmatpush1.bf16.msra.mxu0 0
    %656 = vmatprep.subr.bf16.mxu0 0
    %657 = vmatpush1.bf16.msra.mxu0 0
    %658 = vmatprep.subr.bf16.mxu0 0
    %659 = vmatpush1.bf16.msra.mxu0 0
    %660 = vmatprep.subr.bf16.mxu0 0
    %661 = vmatpush1.bf16.msra.mxu0 0
    %662 = vmatprep.subr.bf16.mxu0 0
    %663 = vmatpush1.bf16.msra.mxu0 0
    %664 = vmatprep.subr.bf16.mxu0 0
    %665 = vmatpush1.bf16.msra.mxu0 0
    %666 = vmatprep.mubr.bf16.mxu0 0
    %667 = vmatmul.mubr.bf16.gmra.mrb[0].mxu0 %v525
    %v668 = vpop.f32.mrb[0].mxu0
    %v669 = vadd.f32 %v547, %v668
    %v670 = vpop.f32.mrb[0].mxu0
    %v671 = vadd.f32 %v551, %v670
    %v672 = vpop.f32.mrb[0].mxu0
    %v673 = vpop.f32.mrb[0].mxu0
    %674 = vdwg.mxu0
    %v675 = vxor.u32 %v669, 2147483648
    %v676 = vxor.u32 %v671, 2147483648
    %v677 = vmul.f32 %v675, 1.442695
    %v678 = vpow.pop %v677
    %v679 = vmul.f32 %v676, 1.442695
    %v680 = vpow.pop %v679
    %v681 = vadd.f32 %v678, 1.0
    %v682 = vadd.f32 %v680, 1.0
    %v683 = vrcp.pop %v681
    %v684 = vmul.f32 1.0, %v683
    %v685 = vrcp.pop %v682
    %v686 = vmul.f32 1.0, %v685
    %v687 = vmul.f32 %v186, %v188
    %v688 = vadd.f32 %v687, %v257
    %v689 = vld [vmem:[%s7] sm:$0xff]
    %v690 = vld [vmem:[%s7 + $0x8] sm:$0xf]
    %v691 = vpack.c.bf16 %v688, %v688
    %v692 = vpack.c.bf16 %v684, %v684
    %v693 = vpack.c.bf16 %v686, %v686
    %v696 = vunpack.c.h.b16 %v689
    %v697 = vunpack.c.l.b16 %v690
    %v698 = vpack.c.b16 %v696, %v696
    %v699 = vpack.c.b16 %v697, %v697
    %702 = vmatprep.subr.bf16.mxu0 %v693
    %703 = vmatpush1.bf16.xpose.msra.mxu0 %v692
    %704 = vmatprep.subr.bf16.mxu0 0
    %705 = vmatpush1.bf16.xpose.msra.mxu0 0
    %706 = vmatprep.subr.bf16.mxu0 0
    %707 = vmatpush1.bf16.xpose.msra.mxu0 0
    %708 = vmatprep.subr.bf16.mxu0 0
    %709 = vmatpush1.bf16.xpose.msra.mxu0 0
    %710 = vmatprep.subr.bf16.mxu0 0
    %711 = vmatpush1.bf16.xpose.msra.mxu0 0
    %712 = vmatprep.subr.bf16.mxu0 0
    %713 = vmatpush1.bf16.xpose.msra.mxu0 0
    %714 = vmatprep.subr.bf16.mxu0 0
    %715 = vmatpush1.bf16.xpose.msra.mxu0 0
    %716 = vmatprep.subr.bf16.mxu0 0
    %717 = vmatpush1.bf16.xpose.msra.mxu0 0
    %718 = vmatprep.subr.bf16.mxu0 0
    %719 = vmatpush1.bf16.xpose.msra.mxu0 0
    %720 = vmatprep.subr.bf16.mxu0 0
    %721 = vmatpush1.bf16.xpose.msra.mxu0 0
    %722 = vmatprep.subr.bf16.mxu0 0
    %723 = vmatpush1.bf16.xpose.msra.mxu0 0
    %724 = vmatprep.subr.bf16.mxu0 0
    %725 = vmatpush1.bf16.xpose.msra.mxu0 0
    %726 = vmatprep.subr.bf16.mxu0 0
    %727 = vmatpush1.bf16.xpose.msra.mxu0 0
    %728 = vmatprep.subr.bf16.mxu0 0
    %729 = vmatpush1.bf16.xpose.msra.mxu0 0
    %730 = vmatprep.subr.bf16.mxu0 0
    %731 = vmatpush1.bf16.xpose.msra.mxu0 0
    %732 = vmatprep.subr.bf16.mxu0 0
    %733 = vmatpush1.bf16.xpose.msra.mxu0 0
    %734 = vmatprep.mubr.bf16.mxu0 %v699
    %735 = vmatmul.mubr.bf16.gmra.mrb[0].mxu0 %v698
    %v736 = vpop.f32.mrb[0].mxu0
    %v737 = vadd.f32 0.0, %v736
    %v738 = vpop.f32.mrb[0].mxu0
    %v739 = vpop.f32.mrb[0].mxu0
    %v740 = vpop.f32.mrb[0].mxu0
    %741 = vdwg.mxu0
    %742 = vmatprep.subr.bf16.mxu0 0
    %743 = vmatpush1.bf16.xpose.msra.mxu0 %v691
    %744 = vmatprep.subr.bf16.mxu0 0
    %745 = vmatpush1.bf16.xpose.msra.mxu0 0
    %746 = vmatprep.subr.bf16.mxu0 0
    %747 = vmatpush1.bf16.xpose.msra.mxu0 0
    %748 = vmatprep.subr.bf16.mxu0 0
    %749 = vmatpush1.bf16.xpose.msra.mxu0 0
    %750 = vmatprep.subr.bf16.mxu0 0
    %751 = vmatpush1.bf16.xpose.msra.mxu0 0
    %752 = vmatprep.subr.bf16.mxu0 0
    %753 = vmatpush1.bf16.xpose.msra.mxu0 0
    %754 = vmatprep.subr.bf16.mxu0 0
    %755 = vmatpush1.bf16.xpose.msra.mxu0 0
    %756 = vmatprep.subr.bf16.mxu0 0
    %757 = vmatpush1.bf16.xpose.msra.mxu0 0
    %758 = vmatprep.subr.bf16.mxu0 0
    %759 = vmatpush1.bf16.xpose.msra.mxu0 0
    %760 = vmatprep.subr.bf16.mxu0 0
    %761 = vmatpush1.bf16.xpose.msra.mxu0 0
    %762 = vmatprep.subr.bf16.mxu0 0
    %763 = vmatpush1.bf16.xpose.msra.mxu0 0
    %764 = vmatprep.subr.bf16.mxu0 0
    %765 = vmatpush1.bf16.xpose.msra.mxu0 0
    %766 = vmatprep.subr.bf16.mxu0 0
    %767 = vmatpush1.bf16.xpose.msra.mxu0 0
    %768 = vmatprep.subr.bf16.mxu0 0
    %769 = vmatpush1.bf16.xpose.msra.mxu0 0
    %770 = vmatprep.subr.bf16.mxu0 0
    %771 = vmatpush1.bf16.xpose.msra.mxu0 0
    %772 = vmatprep.subr.bf16.mxu0 0
    %773 = vmatpush1.bf16.xpose.msra.mxu0 0
    %774 = vmatprep.mubr.bf16.mxu0 0
    %775 = vmatmul.mubr.bf16.gmra.mrb[0].mxu0 %v689
    %v776 = vpop.f32.mrb[0].mxu0
    %v777 = vadd.f32 %v737, %v776
    %v778 = vpop.f32.mrb[0].mxu0
    %v779 = vpop.f32.mrb[0].mxu0
    %v780 = vpop.f32.mrb[0].mxu0
    %781 = vdwg.mxu0
    %vm782 = vcmask 57344
    %783 = vst.msk [vmem:[#allocation10] sm:$0x1] %vm782, %v777
    // Predicated region
    $region50: #{tpu_custom_call.1} parent=1 // pred_check
      _
    $region51: #{tpu_custom_call.1} parent=1 // pred_check_branch
      %785 = sbr.rel (0) target = $region53
    $region52: #{tpu_custom_call.1} parent=1 // pred_region
      %s787 = ssub.s32 16, 16
      %788 = vsyncadd [#allocation4], %s787
      %s790 = sshll.u32 [#allocation10], 4
      %s791 = int_to_ptr.vmem [resolvable:$true] %s790
      %793 = dma.vmem_to_hbm [thread:$0]  %s791, 16, %s8, [#allocation4]
    $region53: #{tpu_custom_call.1} parent=1 // pred_fallthru
      _
    // Predicated region
    $region54: #{tpu_custom_call.1} parent=1 // pred_check
      _
    $region55: #{tpu_custom_call.1} parent=1 // pred_check_branch
      %795 = sbr.rel (0) target = $region57
    $region56: #{tpu_custom_call.1} parent=1 // pred_region
      %796 = dma.done [#allocation4], 16
    $region57: #{tpu_custom_call.1} parent=1 // pred_fallthru
      _
    %797 = vsyncpa [#allocation3], 1
    %798 = vsyncpa [#allocation6], 1
    %799 = vsyncpa [#allocation9], 1
    %800 = vsyncpa [#allocation4], 1

</llo_original>
